<compile_context>
chip_gen: v7x
topology: tpu7x:2x2x1
jax: 0.10.0
libtpu: 0.0.40
codegen_flags: <defaults>
</compile_context>

<pallas_src>
import jax
import jax.numpy as jnp
from jax.experimental import pallas as pl
from jax.experimental.pallas import tpu as pltpu


def unpool_kernel(idx_ref, x_ref, o_ref):
    # idx_ref : SMEM int32[N]        (scalar-prefetch, resident for all steps)
    # x_ref   : VMEM x.dtype[N, TD]  (current lane chunk of the input)
    # o_ref   : VMEM x.dtype[N, TD]  (current lane chunk of the output)
    n = x_ref.shape[0]

    # torch.zeros: rows never targeted by idx stay zero.
    o_ref[...] = jnp.zeros_like(o_ref)

    def scatter_row(i, carry):
        dst = idx_ref[i]
        dst = jnp.where(dst < 0, dst + n, dst)   # PyTorch negative-index wrap
        dst = jnp.clip(dst, 0, n - 1)            # guard against OOB VMEM writes
        o_ref[pl.ds(dst, 1), :] = x_ref[pl.ds(i, 1), :]
        return carry

    # Fully unroll small row counts (LLO scheduler visibility); unroll by 8
    # otherwise to keep the loop body dense without blowing up code size.
    jax.lax.fori_loop(0, n, scatter_row, 0, unroll=(n if n <= 16 else 8))


def unpool(x, idx):
    """x: [N, D], idx: int[N] with values in [-N, N). Returns [N, D]."""
    n, d = x.shape
    idx_i32 = idx.astype(jnp.int32).reshape(n)
    itemsize = jnp.dtype(x.dtype).itemsize

    # Per-generation VMEM budget: ~75% of physical capacity with >=8 MiB
    # headroom (v5e/v6e 128 MiB -> ~96 MiB; v7x 64 MiB -> ~48 MiB).
    try:
        vmem_cap = int(pltpu.get_tpu_info().vmem_capacity_bytes)
    except Exception:
        vmem_cap = 64 << 20  # conservative (v7x-sized) fallback
    budget = max(16 << 20, min(int(vmem_cap * 0.75), vmem_cap - (8 << 20)))

    # Lane-axis tile size.
    if d % 128 != 0:
        td = d  # ragged lane dim: take the whole-D block (full-extent escape)
    else:
        # x + out blocks are double-buffered by the pipeline:
        #   2 arrays * 2 buffers * n * td * itemsize  <=  budget / 2
        max_td = max(128, (((budget // 2) // (4 * n * itemsize)) // 128) * 128)
        td = min(d, max_td)
        # Ensure >= 2 chunks when D allows so the "parallel" grid axis has
        # work to split across v7x's two TensorCores / overlap in the pipeline.
        if td >= d and d >= 256:
            td = ((d // 2 + 127) // 128) * 128
    grid_d = pl.cdiv(d, td)

    return pl.pallas_call(
        unpool_kernel,
        out_shape=jax.ShapeDtypeStruct((n, d), x.dtype),
        grid_spec=pltpu.PrefetchScalarGridSpec(
            num_scalar_prefetch=1,             # idx -> SMEM, visible to index_maps
            grid=(grid_d,),
            in_specs=[pl.BlockSpec((n, td), lambda j, idx: (0, j))],   # x chunk
            out_specs=pl.BlockSpec((n, td), lambda j, idx: (0, j)),    # out chunk
        ),
        compiler_params=pltpu.CompilerParams(
            dimension_semantics=("parallel",),  # lane chunks are independent
            vmem_limit_bytes=int(budget),
        ),
    )(idx_i32, x)


if __name__ == "__main__":
    key = jax.random.PRNGKey(0)
    k_x, k_idx = jax.random.split(key)

    N, D = 8, 128  # num_pooled_nodes=8, embed_dim=128
    x = jax.random.normal(k_x, (N, D), dtype=jnp.float32)
    # idx: indices of the pooled nodes (a permutation of [0, N))
    idx = jax.random.permutation(k_idx, N).astype(jnp.int32)

    out = jax.block_until_ready(unpool(x, idx))

    # Pure-JAX reference of the PyTorch forward.
    ref = jnp.zeros((N, D), dtype=x.dtype).at[idx].set(x)

    assert out.shape == (N, D), out.shape
    assert jnp.array_equal(out, ref), "mismatch vs reference scatter"

    print("KERNEL_OK")
</pallas_src>

<mosaic_0001>
module attributes {stable_mosaic.version = 11 : i64} {
  func.func @unpool_kernel(%arg0: i32, %arg1: memref<8xi32, #tpu.memory_space<smem>>, %arg2: memref<8x128xf32, #tpu.memory_space<vmem>>, %arg3: memref<8x128xf32, #tpu.memory_space<vmem>>) attributes {dimension_semantics = [#tpu.dimension_semantics<parallel>], iteration_bounds = array<i64: 1>, scalar_prefetch = 1 : i64, scratch_operands = 0 : i64, tpu.core_type = #tpu.core_type<tc>, window_params = [{transform_indices = @transform_0, window_bounds = array<i64: 8, 128>}, {transform_indices = @transform_1, window_bounds = array<i64: 8, 128>}]} {
    %cst = arith.constant 0.000000e+00 : f32
    %0 = vector.broadcast %cst : f32 to vector<8x128xf32>
    %c0 = arith.constant 0 : index
    %c0_0 = arith.constant 0 : index
    %1 = vector.load %arg3[%c0, %c0_0] : memref<8x128xf32, #tpu.memory_space<vmem>>, vector<8x128xf32>
    tpu.vector_store %arg3[%c0, %c0_0], %0 {strides = array<i32>} : memref<8x128xf32, #tpu.memory_space<vmem>>, vector<8x128xf32>,
    %c0_i32 = arith.constant 0 : i32
    %2 = arith.index_cast %c0_i32 : i32 to index
    %3 = memref.load %arg1[%2] : memref<8xi32, #tpu.memory_space<smem>>
    %c0_i32_1 = arith.constant 0 : i32
    %4 = arith.cmpi slt, %3, %c0_i32_1 : i32
    %c8_i32 = arith.constant 8 : i32
    %5 = arith.addi %3, %c8_i32 : i32
    %6 = arith.select %4, %5, %3 : i32
    %c0_i32_2 = arith.constant 0 : i32
    %c7_i32 = arith.constant 7 : i32
    %7 = arith.maxsi %c0_i32_2, %6 : i32
    %8 = arith.minsi %c7_i32, %7 : i32
    %9 = arith.index_cast %c0_i32 : i32 to index
    %c0_3 = arith.constant 0 : index
    %10 = vector.load %arg2[%9, %c0_3] : memref<8x128xf32, #tpu.memory_space<vmem>>, vector<1x128xf32>
    %11 = arith.index_cast %8 : i32 to index
    %c0_4 = arith.constant 0 : index
    %12 = vector.load %arg3[%11, %c0_4] : memref<8x128xf32, #tpu.memory_space<vmem>>, vector<1x128xf32>
    tpu.vector_store %arg3[%11, %c0_4], %10 {strides = array<i32>} : memref<8x128xf32, #tpu.memory_space<vmem>>, vector<1x128xf32>,
    %c1_i32 = arith.constant 1 : i32
    %13 = arith.index_cast %c1_i32 : i32 to index
    %14 = memref.load %arg1[%13] : memref<8xi32, #tpu.memory_space<smem>>
    %c0_i32_5 = arith.constant 0 : i32
    %15 = arith.cmpi slt, %14, %c0_i32_5 : i32
    %c8_i32_6 = arith.constant 8 : i32
    %16 = arith.addi %14, %c8_i32_6 : i32
    %17 = arith.select %15, %16, %14 : i32
    %c0_i32_7 = arith.constant 0 : i32
    %c7_i32_8 = arith.constant 7 : i32
    %18 = arith.maxsi %c0_i32_7, %17 : i32
    %19 = arith.minsi %c7_i32_8, %18 : i32
    %20 = arith.index_cast %c1_i32 : i32 to index
    %c0_9 = arith.constant 0 : index
    %21 = vector.load %arg2[%20, %c0_9] : memref<8x128xf32, #tpu.memory_space<vmem>>, vector<1x128xf32>
    %22 = arith.index_cast %19 : i32 to index
    %c0_10 = arith.constant 0 : index
    %23 = vector.load %arg3[%22, %c0_10] : memref<8x128xf32, #tpu.memory_space<vmem>>, vector<1x128xf32>
    tpu.vector_store %arg3[%22, %c0_10], %21 {strides = array<i32>} : memref<8x128xf32, #tpu.memory_space<vmem>>, vector<1x128xf32>,
    %c2_i32 = arith.constant 2 : i32
    %24 = arith.index_cast %c2_i32 : i32 to index
    %25 = memref.load %arg1[%24] : memref<8xi32, #tpu.memory_space<smem>>
    %c0_i32_11 = arith.constant 0 : i32
    %26 = arith.cmpi slt, %25, %c0_i32_11 : i32
    %c8_i32_12 = arith.constant 8 : i32
    %27 = arith.addi %25, %c8_i32_12 : i32
    %28 = arith.select %26, %27, %25 : i32
    %c0_i32_13 = arith.constant 0 : i32
    %c7_i32_14 = arith.constant 7 : i32
    %29 = arith.maxsi %c0_i32_13, %28 : i32
    %30 = arith.minsi %c7_i32_14, %29 : i32
    %31 = arith.index_cast %c2_i32 : i32 to index
    %c0_15 = arith.constant 0 : index
    %32 = vector.load %arg2[%31, %c0_15] : memref<8x128xf32, #tpu.memory_space<vmem>>, vector<1x128xf32>
    %33 = arith.index_cast %30 : i32 to index
    %c0_16 = arith.constant 0 : index
    %34 = vector.load %arg3[%33, %c0_16] : memref<8x128xf32, #tpu.memory_space<vmem>>, vector<1x128xf32>
    tpu.vector_store %arg3[%33, %c0_16], %32 {strides = array<i32>} : memref<8x128xf32, #tpu.memory_space<vmem>>, vector<1x128xf32>,
    %c3_i32 = arith.constant 3 : i32
    %35 = arith.index_cast %c3_i32 : i32 to index
    %36 = memref.load %arg1[%35] : memref<8xi32, #tpu.memory_space<smem>>
    %c0_i32_17 = arith.constant 0 : i32
    %37 = arith.cmpi slt, %36, %c0_i32_17 : i32
    %c8_i32_18 = arith.constant 8 : i32
    %38 = arith.addi %36, %c8_i32_18 : i32
    %39 = arith.select %37, %38, %36 : i32
    %c0_i32_19 = arith.constant 0 : i32
    %c7_i32_20 = arith.constant 7 : i32
    %40 = arith.maxsi %c0_i32_19, %39 : i32
    %41 = arith.minsi %c7_i32_20, %40 : i32
    %42 = arith.index_cast %c3_i32 : i32 to index
    %c0_21 = arith.constant 0 : index
    %43 = vector.load %arg2[%42, %c0_21] : memref<8x128xf32, #tpu.memory_space<vmem>>, vector<1x128xf32>
    %44 = arith.index_cast %41 : i32 to index
    %c0_22 = arith.constant 0 : index
    %45 = vector.load %arg3[%44, %c0_22] : memref<8x128xf32, #tpu.memory_space<vmem>>, vector<1x128xf32>
    tpu.vector_store %arg3[%44, %c0_22], %43 {strides = array<i32>} : memref<8x128xf32, #tpu.memory_space<vmem>>, vector<1x128xf32>,
    %c4_i32 = arith.constant 4 : i32
    %46 = arith.index_cast %c4_i32 : i32 to index
    %47 = memref.load %arg1[%46] : memref<8xi32, #tpu.memory_space<smem>>
    %c0_i32_23 = arith.constant 0 : i32
    %48 = arith.cmpi slt, %47, %c0_i32_23 : i32
    %c8_i32_24 = arith.constant 8 : i32
    %49 = arith.addi %47, %c8_i32_24 : i32
    %50 = arith.select %48, %49, %47 : i32
    %c0_i32_25 = arith.constant 0 : i32
    %c7_i32_26 = arith.constant 7 : i32
    %51 = arith.maxsi %c0_i32_25, %50 : i32
    %52 = arith.minsi %c7_i32_26, %51 : i32
    %53 = arith.index_cast %c4_i32 : i32 to index
    %c0_27 = arith.constant 0 : index
    %54 = vector.load %arg2[%53, %c0_27] : memref<8x128xf32, #tpu.memory_space<vmem>>, vector<1x128xf32>
    %55 = arith.index_cast %52 : i32 to index
    %c0_28 = arith.constant 0 : index
    %56 = vector.load %arg3[%55, %c0_28] : memref<8x128xf32, #tpu.memory_space<vmem>>, vector<1x128xf32>
    tpu.vector_store %arg3[%55, %c0_28], %54 {strides = array<i32>} : memref<8x128xf32, #tpu.memory_space<vmem>>, vector<1x128xf32>,
    %c5_i32 = arith.constant 5 : i32
    %57 = arith.index_cast %c5_i32 : i32 to index
    %58 = memref.load %arg1[%57] : memref<8xi32, #tpu.memory_space<smem>>
    %c0_i32_29 = arith.constant 0 : i32
    %59 = arith.cmpi slt, %58, %c0_i32_29 : i32
    %c8_i32_30 = arith.constant 8 : i32
    %60 = arith.addi %58, %c8_i32_30 : i32
    %61 = arith.select %59, %60, %58 : i32
    %c0_i32_31 = arith.constant 0 : i32
    %c7_i32_32 = arith.constant 7 : i32
    %62 = arith.maxsi %c0_i32_31, %61 : i32
    %63 = arith.minsi %c7_i32_32, %62 : i32
    %64 = arith.index_cast %c5_i32 : i32 to index
    %c0_33 = arith.constant 0 : index
    %65 = vector.load %arg2[%64, %c0_33] : memref<8x128xf32, #tpu.memory_space<vmem>>, vector<1x128xf32>
    %66 = arith.index_cast %63 : i32 to index
    %c0_34 = arith.constant 0 : index
    %67 = vector.load %arg3[%66, %c0_34] : memref<8x128xf32, #tpu.memory_space<vmem>>, vector<1x128xf32>
    tpu.vector_store %arg3[%66, %c0_34], %65 {strides = array<i32>} : memref<8x128xf32, #tpu.memory_space<vmem>>, vector<1x128xf32>,
    %c6_i32 = arith.constant 6 : i32
    %68 = arith.index_cast %c6_i32 : i32 to index
    %69 = memref.load %arg1[%68] : memref<8xi32, #tpu.memory_space<smem>>
    %c0_i32_35 = arith.constant 0 : i32
    %70 = arith.cmpi slt, %69, %c0_i32_35 : i32
    %c8_i32_36 = arith.constant 8 : i32
    %71 = arith.addi %69, %c8_i32_36 : i32
    %72 = arith.select %70, %71, %69 : i32
    %c0_i32_37 = arith.constant 0 : i32
    %c7_i32_38 = arith.constant 7 : i32
    %73 = arith.maxsi %c0_i32_37, %72 : i32
    %74 = arith.minsi %c7_i32_38, %73 : i32
    %75 = arith.index_cast %c6_i32 : i32 to index
    %c0_39 = arith.constant 0 : index
    %76 = vector.load %arg2[%75, %c0_39] : memref<8x128xf32, #tpu.memory_space<vmem>>, vector<1x128xf32>
    %77 = arith.index_cast %74 : i32 to index
    %c0_40 = arith.constant 0 : index
    %78 = vector.load %arg3[%77, %c0_40] : memref<8x128xf32, #tpu.memory_space<vmem>>, vector<1x128xf32>
    tpu.vector_store %arg3[%77, %c0_40], %76 {strides = array<i32>} : memref<8x128xf32, #tpu.memory_space<vmem>>, vector<1x128xf32>,
    %c7_i32_41 = arith.constant 7 : i32
    %79 = arith.index_cast %c7_i32_41 : i32 to index
    %80 = memref.load %arg1[%79] : memref<8xi32, #tpu.memory_space<smem>>
    %c0_i32_42 = arith.constant 0 : i32
    %81 = arith.cmpi slt, %80, %c0_i32_42 : i32
    %c8_i32_43 = arith.constant 8 : i32
    %82 = arith.addi %80, %c8_i32_43 : i32
    %83 = arith.select %81, %82, %80 : i32
    %c0_i32_44 = arith.constant 0 : i32
    %c7_i32_45 = arith.constant 7 : i32
    %84 = arith.maxsi %c0_i32_44, %83 : i32
    %85 = arith.minsi %c7_i32_45, %84 : i32
    %86 = arith.index_cast %c7_i32_41 : i32 to index
    %c0_46 = arith.constant 0 : index
    %87 = vector.load %arg2[%86, %c0_46] : memref<8x128xf32, #tpu.memory_space<vmem>>, vector<1x128xf32>
    %88 = arith.index_cast %85 : i32 to index
    %c0_47 = arith.constant 0 : index
    %89 = vector.load %arg3[%88, %c0_47] : memref<8x128xf32, #tpu.memory_space<vmem>>, vector<1x128xf32>
    tpu.vector_store %arg3[%88, %c0_47], %87 {strides = array<i32>} : memref<8x128xf32, #tpu.memory_space<vmem>>, vector<1x128xf32>,
    %c8_i32_48 = arith.constant 8 : i32
    return
  }
  func.func @transform_0(%arg0: i32, %arg1: memref<8xi32, #tpu.memory_space<smem>>) -> (i32, i32) {
    %c0_i32 = arith.constant 0 : i32
    %c0_i32_0 = arith.constant 0 : i32
    return %c0_i32, %arg0 : i32, i32
  }
  func.func @transform_1(%arg0: i32, %arg1: memref<8xi32, #tpu.memory_space<smem>>) -> (i32, i32) {
    %c0_i32 = arith.constant 0 : i32
    %c0_i32_0 = arith.constant 0 : i32
    return %c0_i32, %arg0 : i32, i32
  }
}

</mosaic_0001>

<llo_original>
// kernel: tpu_custom_call.1
$region0: #{tpu_custom_call.1}
  #allocation0 [shape = 'u32[]', space=smem, size = 0x4, offset = 0x4, fixed_abs, tag = 'smem constant byte address 0x4 - core index']
  #allocation1 [shape = 'u32[144,128]{1,0:T(1,128)}', space=vmem, size = 0x12000, scoped, tag = 'internal scratch']
  #allocation2 [shape = 's32[1]{0}', space=sflag, size = 0x4, scoped, tag = 'scoped memory for tpu_custom_call.1']
  #allocation3 [shape = 'u8[512]{0}', space=smem, size = 0x200, scoped, tag = 'prefetched SMEM operand 0']
  %s0 = inlined_call_operand.hbm [shape: s32[8], index: 0, kind: input, shape index: {}]
  %s1 = inlined_call_operand.hbm [shape: f32[8,128], index: 1, kind: input, shape index: {}]
  %s2 = inlined_call_operand.hbm [shape: f32[8,128], index: 2, kind: output, shape index: {}]
  %s3 = sld [smem:[#allocation0]]
  $region18: #{tpu_custom_call.1} parent=0
    _
  %s5 = ssub.s32 1, %s3
  %s6 = scalar_select 0, %s5, %s3
  %8 = dma.hbm_to_smem %s0, 16, [#allocation3], [#allocation2]
  %9 = dma.done [#allocation2], 16
  %10 = sfence
  $region1: #{tpu_custom_call.1} parent=0
    #allocation4 [shape = 'u8[4096]{0}', space=vmem, size = 0x1000, scoped, tag = 'input window, operand 1, single buffered']
    #allocation5 [shape = 's32[1]{0}', space=sflag, size = 0x4, scoped, tag = 'scoped memory for tpu_custom_call.1']
    #allocation6 [shape = 's32[1]{0}', space=sflag, size = 0x4, scoped, tag = 'scoped memory for tpu_custom_call.1']
    #allocation7 [shape = 'u8[4096]{0}', space=vmem, size = 0x1000, scoped, tag = 'output window, operand 0, single buffered']
    %11 = vsyncpa [#allocation5], 0
    %12 = vsyncpa [#allocation6], 0
    // Predicated region
    $region2: #{tpu_custom_call.1} parent=1 // pred_check
      _
    $region3: #{tpu_custom_call.1} parent=1 // pred_check_branch
      %14 = sbr.rel (0) target = $region5
    $region4: #{tpu_custom_call.1} parent=1 // pred_region
      %s16 = ssub.s32 128, 128
      %17 = vsyncadd [#allocation5], %s16
      %s19 = sshll.u32 [#allocation4], 4
      %s20 = int_to_ptr.vmem [resolvable:$true] %s19
      %22 = dma.hbm_to_vmem [thread:$0]  %s1, 128, %s20, [#allocation5]
    $region5: #{tpu_custom_call.1} parent=1 // pred_fallthru
      _
    // Predicated region
    $region6: #{tpu_custom_call.1} parent=1 // pred_check
      _
    $region7: #{tpu_custom_call.1} parent=1 // pred_check_branch
      %24 = sbr.rel (0) target = $region9
    $region8: #{tpu_custom_call.1} parent=1 // pred_region
      %25 = dma.done [#allocation5], 128
    $region9: #{tpu_custom_call.1} parent=1 // pred_fallthru
      _
    %26 = vst [vmem:[#allocation7] sm:$0xff] 0.0
    %s27 = sld [smem:[#allocation3]]
    %p28 = scmp.lt.s32.totalorder %s27, 0
    %s29 = sadd.s32 %s27, 8
    %s30 = scalar_select %p28, %s29, %s27
    %p31 = scmp.gt.s32.totalorder %s30, 0
    %s32 = scalar_select %p31, %s30, 0
    %p33 = scmp.lt.s32.totalorder %s32, 7
    %s34 = scalar_select %p33, %s32, 7
    %v35 = vld [vmem:[#allocation4] sm:$0x1]
    %s36 = scalar_lea.vmem [#allocation7], %s34
    %37 = vst [vmem:[%s36] sm:$0x1] %v35
    %s38 = sld [smem:[#allocation3 + $0x1]]
    %p39 = scmp.lt.s32.totalorder %s38, 0
    %s40 = sadd.s32 %s38, 8
    %s41 = scalar_select %p39, %s40, %s38
    %p42 = scmp.gt.s32.totalorder %s41, 0
    %s43 = scalar_select %p42, %s41, 0
    %p44 = scmp.lt.s32.totalorder %s43, 7
    %s45 = scalar_select %p44, %s43, 7
    %v46 = vld [vmem:[#allocation4 + $0x1] sm:$0x1]
    %s47 = scalar_lea.vmem [#allocation7], %s45
    %48 = vst [vmem:[%s47] sm:$0x1] %v46
    %s49 = sld [smem:[#allocation3 + $0x2]]
    %p50 = scmp.lt.s32.totalorder %s49, 0
    %s51 = sadd.s32 %s49, 8
    %s52 = scalar_select %p50, %s51, %s49
    %p53 = scmp.gt.s32.totalorder %s52, 0
    %s54 = scalar_select %p53, %s52, 0
    %p55 = scmp.lt.s32.totalorder %s54, 7
    %s56 = scalar_select %p55, %s54, 7
    %v57 = vld [vmem:[#allocation4 + $0x2] sm:$0x1]
    %s58 = scalar_lea.vmem [#allocation7], %s56
    %59 = vst [vmem:[%s58] sm:$0x1] %v57
    %s60 = sld [smem:[#allocation3 + $0x3]]
    %p61 = scmp.lt.s32.totalorder %s60, 0
    %s62 = sadd.s32 %s60, 8
    %s63 = scalar_select %p61, %s62, %s60
    %p64 = scmp.gt.s32.totalorder %s63, 0
    %s65 = scalar_select %p64, %s63, 0
    %p66 = scmp.lt.s32.totalorder %s65, 7
    %s67 = scalar_select %p66, %s65, 7
    %v68 = vld [vmem:[#allocation4 + $0x3] sm:$0x1]
    %s69 = scalar_lea.vmem [#allocation7], %s67
    %70 = vst [vmem:[%s69] sm:$0x1] %v68
    %s71 = sld [smem:[#allocation3 + $0x4]]
    %p72 = scmp.lt.s32.totalorder %s71, 0
    %s73 = sadd.s32 %s71, 8
    %s74 = scalar_select %p72, %s73, %s71
    %p75 = scmp.gt.s32.totalorder %s74, 0
    %s76 = scalar_select %p75, %s74, 0
    %p77 = scmp.lt.s32.totalorder %s76, 7
    %s78 = scalar_select %p77, %s76, 7
    %v79 = vld [vmem:[#allocation4 + $0x4] sm:$0x1]
    %s80 = scalar_lea.vmem [#allocation7], %s78
    %81 = vst [vmem:[%s80] sm:$0x1] %v79
    %s82 = sld [smem:[#allocation3 + $0x5]]
    %p83 = scmp.lt.s32.totalorder %s82, 0
    %s84 = sadd.s32 %s82, 8
    %s85 = scalar_select %p83, %s84, %s82
    %p86 = scmp.gt.s32.totalorder %s85, 0
    %s87 = scalar_select %p86, %s85, 0
    %p88 = scmp.lt.s32.totalorder %s87, 7
    %s89 = scalar_select %p88, %s87, 7
    %v90 = vld [vmem:[#allocation4 + $0x5] sm:$0x1]
    %s91 = scalar_lea.vmem [#allocation7], %s89
    %92 = vst [vmem:[%s91] sm:$0x1] %v90
    %s93 = sld [smem:[#allocation3 + $0x6]]
    %p94 = scmp.lt.s32.totalorder %s93, 0
    %s95 = sadd.s32 %s93, 8
    %s96 = scalar_select %p94, %s95, %s93
    %p97 = scmp.gt.s32.totalorder %s96, 0
    %s98 = scalar_select %p97, %s96, 0
    %p99 = scmp.lt.s32.totalorder %s98, 7
    %s100 = scalar_select %p99, %s98, 7
    %v101 = vld [vmem:[#allocation4 + $0x6] sm:$0x1]
    %s102 = scalar_lea.vmem [#allocation7], %s100
    %103 = vst [vmem:[%s102] sm:$0x1] %v101
    %s104 = sld [smem:[#allocation3 + $0x7]]
    %p105 = scmp.lt.s32.totalorder %s104, 0
    %s106 = sadd.s32 %s104, 8
    %s107 = scalar_select %p105, %s106, %s104
    %p108 = scmp.gt.s32.totalorder %s107, 0
    %s109 = scalar_select %p108, %s107, 0
    %p110 = scmp.lt.s32.totalorder %s109, 7
    %s111 = scalar_select %p110, %s109, 7
    %v112 = vld [vmem:[#allocation4 + $0x7] sm:$0x1]
    %s113 = scalar_lea.vmem [#allocation7], %s111
    %114 = vst [vmem:[%s113] sm:$0x1] %v112
    // Predicated region
    $region10: #{tpu_custom_call.1} parent=1 // pred_check
      _
    $region11: #{tpu_custom_call.1} parent=1 // pred_check_branch
      %116 = sbr.rel (0) target = $region13
    $region12: #{tpu_custom_call.1} parent=1 // pred_region
      %s118 = ssub.s32 128, 128
      %119 = vsyncadd [#allocation6], %s118
      %s121 = sshll.u32 [#allocation7], 4
      %s122 = int_to_ptr.vmem [resolvable:$true] %s121
      %124 = dma.vmem_to_hbm [thread:$0]  %s122, 128, %s2, [#allocation6]
    $region13: #{tpu_custom_call.1} parent=1 // pred_fallthru
      _
    // Predicated region
    $region14: #{tpu_custom_call.1} parent=1 // pred_check
      _
    $region15: #{tpu_custom_call.1} parent=1 // pred_check_branch
      %126 = sbr.rel (0) target = $region17
    $region16: #{tpu_custom_call.1} parent=1 // pred_region
      %127 = dma.done [#allocation6], 128
    $region17: #{tpu_custom_call.1} parent=1 // pred_fallthru
      _
    %128 = vsyncpa [#allocation5], 1
    %129 = vsyncpa [#allocation6], 1

</llo_original>
